<compile_context>
chip_gen: v7x
topology: tpu7x:2x2x1
jax: 0.10.0
libtpu: 0.0.40
codegen_flags: <defaults>
</compile_context>

<pallas_src>
import functools
import math

import jax
import jax.numpy as jnp
from jax.experimental import pallas as pl
from jax.experimental.pallas import tpu as pltpu

EPS = 1e-5  # nn.LayerNorm default eps


def _round_up(x, m):
    return ((x + m - 1) // m) * m


def _layernorm(x, g, b):
    mu = jnp.mean(x, axis=-1, keepdims=True)
    var = jnp.mean((x - mu) ** 2, axis=-1, keepdims=True)
    return (x - mu) * jax.lax.rsqrt(var + EPS) * g + b


# ---------------------------------------------------------------------------
# Patch embedding: tiled matmul (conv with kernel == stride == patch)
# ---------------------------------------------------------------------------

def _patch_embed_kernel(x_ref, w_ref, b_ref, o_ref):
    o_ref[...] = (
        jnp.dot(x_ref[...], w_ref[...], preferred_element_type=jnp.float32)
        + b_ref[...]
    )


def patch_embed_pallas(patches_bf16, w_bf16, b_f32):
    M, K = patches_bf16.shape
    D = w_bf16.shape[1]
    tm = 128 if M >= 128 else _round_up(M, 8)
    Mp = _round_up(M, tm)
    tn = 128 if (D % 128 == 0 and D >= 128) else D
    if Mp != M:
        patches_bf16 = jnp.pad(patches_bf16, ((0, Mp - M), (0, 0)))

    out = pl.pallas_call(
        _patch_embed_kernel,
        out_shape=jax.ShapeDtypeStruct((Mp, D), jnp.float32),
        grid=(Mp // tm, D // tn),
        in_specs=[
            pl.BlockSpec((tm, K), lambda i, j: (i, 0)),
            pl.BlockSpec((K, tn), lambda i, j: (0, j)),
            pl.BlockSpec((1, tn), lambda i, j: (0, j)),
        ],
        out_specs=pl.BlockSpec((tm, tn), lambda i, j: (i, j)),
        compiler_params=pltpu.CompilerParams(
            dimension_semantics=("parallel", "parallel")),
    )(patches_bf16, w_bf16, b_f32)
    return out[:M]


# ---------------------------------------------------------------------------
# Fused transformer: all blocks + final LayerNorm in one pallas_call
# ---------------------------------------------------------------------------

def _vit_blocks_kernel(x_ref,
                       ln1g, ln1b, qkvw, qkvb, projw, projb,
                       ln2g, ln2b, fc1w, fc1b, fc2w, fc2b,
                       normg, normb,
                       o_ref, act_ref,
                       *, num_heads, scale, valid_t):
    d = pl.program_id(0)
    B, Tp, D = act_ref.shape
    hd = D // num_heads
    M = B * Tp

    # Load tokens into the resident VMEM activation on the first block.
    @pl.when(d == 0)
    def _():
        act_ref[...] = x_ref[...]

    x2 = act_ref[...].reshape(M, D)                        # [B*Tp, D] f32

    # ----- attention branch (pre-LN) --------------------------------------
    xn = _layernorm(x2, ln1g[0], ln1b[0])
    qkv = (jnp.dot(xn.astype(jnp.bfloat16), qkvw[0],
                   preferred_element_type=jnp.float32) + qkvb[0])   # [M, 3D]
    qkv = qkv.reshape(B, Tp, 3 * D)
    # Fold the attention scale into q (cheaper than scaling the TxT scores).
    q = (qkv[:, :, 0 * D:1 * D] * scale).astype(jnp.bfloat16)       # [B, Tp, D]
    k = qkv[:, :, 1 * D:2 * D].astype(jnp.bfloat16)
    v = qkv[:, :, 2 * D:3 * D].astype(jnp.bfloat16)

    # Mask padded key tokens (token axis padded from valid_t -> Tp).
    key_valid = jax.lax.broadcasted_iota(jnp.int32, (1, 1, Tp), 2) < valid_t

    # TODO(synk): Mosaic batched dot_general is only exercised with a single
    # leading batch dim here, so heads are unrolled statically (H is small)
    # while each head's QK^T / PV are B-batched einsums (no explicit k.T).
    head_outs = []
    for h in range(num_heads):
        sl = slice(h * hd, (h + 1) * hd)
        s = jnp.einsum('bqd,bkd->bqk', q[:, :, sl], k[:, :, sl],
                       preferred_element_type=jnp.float32)          # [B,Tp,Tp]
        s = jnp.where(key_valid, s, jnp.float32(-1e30))
        p = jax.nn.softmax(s, axis=-1)                               # f32
        head_outs.append(
            jnp.einsum('bqk,bkd->bqd', p.astype(jnp.bfloat16), v[:, :, sl],
                       preferred_element_type=jnp.float32))
    ctx = jnp.concatenate(head_outs, axis=-1).reshape(M, D)          # (h d) order
    attn_out = (jnp.dot(ctx.astype(jnp.bfloat16), projw[0],
                        preferred_element_type=jnp.float32) + projb[0])
    x2 = x2 + attn_out

    # ----- MLP branch (pre-LN) ---------------------------------------------
    xn2 = _layernorm(x2, ln2g[0], ln2b[0])
    h1 = (jnp.dot(xn2.astype(jnp.bfloat16), fc1w[0],
                  preferred_element_type=jnp.float32) + fc1b[0])
    h1 = jax.nn.gelu(h1, approximate=False)            # exact GELU == nn.GELU()
    h2 = (jnp.dot(h1.astype(jnp.bfloat16), fc2w[0],
                  preferred_element_type=jnp.float32) + fc2b[0])
    x2 = x2 + h2

    act_ref[...] = x2.reshape(B, Tp, D)

    # Final LayerNorm fused into the last block's epilogue.
    @pl.when(d == pl.num_programs(0) - 1)
    def _():
        o_ref[...] = _layernorm(x2, normg[...], normb[...]).reshape(B, Tp, D)


def vit_blocks_pallas(tok, params, num_heads, scale, valid_t):
    B, Tp, D = tok.shape
    depth = params["qkv_w"].shape[0]

    def per_block(arr):
        nd = arr.ndim
        return pl.BlockSpec((1,) + arr.shape[1:],
                            lambda d, _nd=nd: (d,) + (0,) * (_nd - 1))

    kernel = functools.partial(_vit_blocks_kernel, num_heads=num_heads,
                               scale=scale, valid_t=valid_t)
    return pl.pallas_call(
        kernel,
        out_shape=jax.ShapeDtypeStruct((B, Tp, D), jnp.float32),
        grid=(depth,),
        in_specs=[
            pl.BlockSpec((B, Tp, D), lambda d: (0, 0, 0)),   # tokens (resident)
            per_block(params["ln1_g"]), per_block(params["ln1_b"]),
            per_block(params["qkv_w"]), per_block(params["qkv_b"]),
            per_block(params["proj_w"]), per_block(params["proj_b"]),
            per_block(params["ln2_g"]), per_block(params["ln2_b"]),
            per_block(params["fc1_w"]), per_block(params["fc1_b"]),
            per_block(params["fc2_w"]), per_block(params["fc2_b"]),
            pl.BlockSpec((1, D), lambda d: (0, 0)),          # final-LN gamma
            pl.BlockSpec((1, D), lambda d: (0, 0)),          # final-LN beta
        ],
        out_specs=pl.BlockSpec((B, Tp, D), lambda d: (0, 0, 0)),
        scratch_shapes=[pltpu.VMEM((B, Tp, D), jnp.float32)],
        compiler_params=pltpu.CompilerParams(
            dimension_semantics=("arbitrary",),      # blocks are sequential
            vmem_limit_bytes=48 * 1024 * 1024),
    )(tok,
      params["ln1_g"], params["ln1_b"], params["qkv_w"], params["qkv_b"],
      params["proj_w"], params["proj_b"], params["ln2_g"], params["ln2_b"],
      params["fc1_w"], params["fc1_b"], params["fc2_w"], params["fc2_b"],
      params["norm_g"], params["norm_b"])


# ---------------------------------------------------------------------------
# Parameters (deterministic, synthetic)
# ---------------------------------------------------------------------------

def _xavier_uniform(key, shape):
    limit = math.sqrt(6.0 / (shape[0] + shape[1]))
    return jax.random.uniform(key, shape, jnp.float32, -limit, limit)


def init_params(key, cfg):
    C, p, D = cfg["in_chans"], cfg["patch_size"], cfg["embed_dim"]
    depth = cfg["depth"]
    Hm = int(D * cfg["mlp_ratio"])
    g = cfg["img_size"] // p
    N = g * g
    keys = jax.random.split(key, 3 + depth)
    blk_keys = [jax.random.split(keys[3 + i], 4) for i in range(depth)]

    def stack(idx, shape):
        return jnp.stack([_xavier_uniform(blk_keys[i][idx], shape)
                          for i in range(depth)])

    # NOTE: if real PyTorch Conv2d weights are loaded, patch_w must be
    # weight.reshape(D, C*p*p).T to match the (C, ph, pw) flatten order below.
    return {
        "patch_w": _xavier_uniform(keys[0], (C * p * p, D)).astype(jnp.bfloat16),
        "patch_b": jnp.zeros((1, D), jnp.float32),
        "cls_token": 0.02 * jax.random.normal(keys[1], (1, 1, D), jnp.float32),
        "pos_embed": 0.02 * jax.random.normal(keys[2], (1, N + 1, D), jnp.float32),
        "norm_g": jnp.ones((1, D), jnp.float32),
        "norm_b": jnp.zeros((1, D), jnp.float32),
        # per-block params stacked along a leading depth axis
        "ln1_g": jnp.ones((depth, 1, D), jnp.float32),
        "ln1_b": jnp.zeros((depth, 1, D), jnp.float32),
        "ln2_g": jnp.ones((depth, 1, D), jnp.float32),
        "ln2_b": jnp.zeros((depth, 1, D), jnp.float32),
        "qkv_w": stack(0, (D, 3 * D)).astype(jnp.bfloat16),
        "qkv_b": jnp.zeros((depth, 1, 3 * D), jnp.float32),
        "proj_w": stack(1, (D, D)).astype(jnp.bfloat16),
        "proj_b": jnp.zeros((depth, 1, D), jnp.float32),
        "fc1_w": stack(2, (D, Hm)).astype(jnp.bfloat16),
        "fc1_b": jnp.zeros((depth, 1, Hm), jnp.float32),
        "fc2_w": stack(3, (Hm, D)).astype(jnp.bfloat16),
        "fc2_b": jnp.zeros((depth, 1, D), jnp.float32),
    }


# ---------------------------------------------------------------------------
# Forward pass
# ---------------------------------------------------------------------------

def vit_forward(x, params, cfg):
    B, C, H, W = x.shape
    p = cfg["patch_size"]
    D = cfg["embed_dim"]
    num_heads = cfg["num_heads"]
    scale = (D // num_heads) ** (-0.5)
    gh, gw = H // p, W // p
    N = gh * gw
    T = N + 1
    Tp = _round_up(T, 8)             # pad token axis to a sublane multiple

    # Patch extraction (glue): NCHW -> [B*N, C*p*p], (C, ph, pw) flatten order.
    patches = (
        x.reshape(B, C, gh, p, gw, p)
         .transpose(0, 2, 4, 1, 3, 5)
         .reshape(B * N, C * p * p)
    )
    emb = patch_embed_pallas(patches.astype(jnp.bfloat16),
                             params["patch_w"], params["patch_b"]).reshape(B, N, D)

    # cls token + positional embedding (glue), then pad tokens to Tp.
    cls = jnp.broadcast_to(params["cls_token"], (B, 1, D))
    tok = jnp.concatenate([cls, emb], axis=1) + params["pos_embed"]   # [B, T, D]
    tok = jnp.pad(tok, ((0, 0), (0, Tp - T), (0, 0)))                 # [B, Tp, D]

    # All transformer blocks + final LayerNorm, fused in a single pallas_call.
    out = vit_blocks_pallas(tok, params, num_heads, scale, valid_t=T)
    return out[:, :T, :]


# ---------------------------------------------------------------------------

if __name__ == "__main__":
    cfg = dict(
        img_size=16,
        patch_size=8,
        in_chans=3,
        embed_dim=32,
        depth=2,
        num_heads=4,
        mlp_ratio=4.0,
    )
    key = jax.random.PRNGKey(0)
    kx, kp = jax.random.split(key)
    x = jax.random.normal(kx, (2, cfg["in_chans"], cfg["img_size"], cfg["img_size"]),
                          jnp.float32)
    params = init_params(kp, cfg)

    out = jax.block_until_ready(vit_forward(x, params, cfg))

    T = (cfg["img_size"] // cfg["patch_size"]) ** 2 + 1
    assert out.shape == (2, T, cfg["embed_dim"]), out.shape
    assert bool(jnp.all(jnp.isfinite(out)))
    print("KERNEL_OK")
</pallas_src>

<mosaic_0001>
module attributes {stable_mosaic.version = 11 : i64} {
  func.func @_patch_embed_kernel(%arg0: i32, %arg1: i32, %arg2: memref<8x192xbf16, #tpu.memory_space<vmem>>, %arg3: memref<192x32xbf16, #tpu.memory_space<vmem>>, %arg4: memref<1x32xf32, #tpu.memory_space<vmem>>, %arg5: memref<8x32xf32, #tpu.memory_space<vmem>>) attributes {dimension_semantics = [#tpu.dimension_semantics<parallel>, #tpu.dimension_semantics<parallel>], iteration_bounds = array<i64: 1, 1>, scalar_prefetch = 0 : i64, scratch_operands = 0 : i64, tpu.core_type = #tpu.core_type<tc>, window_params = [{transform_indices = @transform_0, window_bounds = array<i64: 8, 192>}, {transform_indices = @transform_1, window_bounds = array<i64: 192, 32>}, {transform_indices = @transform_2, window_bounds = array<i64: 1, 32>}, {transform_indices = @transform_3, window_bounds = array<i64: 8, 32>}]} {
    %c0 = arith.constant 0 : index
    %c0_0 = arith.constant 0 : index
    %0 = vector.load %arg2[%c0, %c0_0] : memref<8x192xbf16, #tpu.memory_space<vmem>>, vector<8x192xbf16>
    %c0_1 = arith.constant 0 : index
    %c0_2 = arith.constant 0 : index
    %1 = vector.load %arg3[%c0_1, %c0_2] : memref<192x32xbf16, #tpu.memory_space<vmem>>, vector<192x32xbf16>
    %cst = arith.constant dense<0.000000e+00> : vector<8x32xf32>
    %2 = tpu.matmul %0, %1, %cst {dimension_numbers = #tpu.dot_dimension_numbers<[1], [0], [0], [1], [0, 0, 1, 1], [], []>} : vector<8x192xbf16>, vector<192x32xbf16>, vector<8x32xf32> -> vector<8x32xf32>
    %c0_3 = arith.constant 0 : index
    %c0_4 = arith.constant 0 : index
    %3 = vector.load %arg4[%c0_3, %c0_4] : memref<1x32xf32, #tpu.memory_space<vmem>>, vector<1x32xf32>
    %4 = vector.broadcast %3 : vector<1x32xf32> to vector<8x32xf32>
    %5 = arith.addf %2, %4 : vector<8x32xf32>
    %c0_5 = arith.constant 0 : index
    %c0_6 = arith.constant 0 : index
    %6 = vector.load %arg5[%c0_5, %c0_6] : memref<8x32xf32, #tpu.memory_space<vmem>>, vector<8x32xf32>
    tpu.vector_store %arg5[%c0_5, %c0_6], %5 {strides = array<i32>} : memref<8x32xf32, #tpu.memory_space<vmem>>, vector<8x32xf32>,
    return
  }
  func.func @transform_0(%arg0: i32, %arg1: i32) -> (i32, i32) {
    %c0_i32 = arith.constant 0 : i32
    %c0_i32_0 = arith.constant 0 : i32
    return %arg0, %c0_i32 : i32, i32
  }
  func.func @transform_1(%arg0: i32, %arg1: i32) -> (i32, i32) {
    %c0_i32 = arith.constant 0 : i32
    %c0_i32_0 = arith.constant 0 : i32
    return %c0_i32, %arg1 : i32, i32
  }
  func.func @transform_2(%arg0: i32, %arg1: i32) -> (i32, i32) {
    %c0_i32 = arith.constant 0 : i32
    %c0_i32_0 = arith.constant 0 : i32
    return %c0_i32, %arg1 : i32, i32
  }
  func.func @transform_3(%arg0: i32, %arg1: i32) -> (i32, i32) {
    %c0_i32 = arith.constant 0 : i32
    return %arg0, %arg1 : i32, i32
  }
}

</mosaic_0001>

<llo_original>
// kernel: tpu_custom_call.1
$region0: #{tpu_custom_call.1}
  #allocation0 [shape = 'u32[]', space=smem, size = 0x4, offset = 0x4, fixed_abs, tag = 'smem constant byte address 0x4 - core index']
  #allocation1 [shape = 'u32[144,128]{1,0:T(1,128)}', space=vmem, size = 0x12000, scoped, tag = 'internal scratch']
  %s0 = inlined_call_operand.vmem [shape: bf16[8,192], index: 0, kind: input, shape index: {}]
  %s1 = inlined_call_operand.vmem [shape: bf16[192,32], index: 1, kind: input, shape index: {}]
  %s2 = inlined_call_operand.vmem [shape: f32[1,32], index: 2, kind: input, shape index: {}]
  %s3 = inlined_call_operand.hbm [shape: f32[8,32], index: 3, kind: output, shape index: {}]
  %s4 = sld [smem:[#allocation0]]
  $region22: #{tpu_custom_call.1} parent=0
    _
  %s6 = ssub.s32 1, %s4
  %s7 = scalar_select 0, %s6, %s4
  $region1: #{tpu_custom_call.1} parent=0
    #allocation2 [shape = 'u8[4096]{0}', space=vmem, size = 0x1000, scoped, tag = 'output window, operand 0, single buffered']
    #allocation3 [shape = 's32[1]{0}', space=sflag, size = 0x4, scoped, tag = 'scoped memory for tpu_custom_call.1']
    %8 = vsyncpa [#allocation3], 0
    // Predicated region
    $region2: #{tpu_custom_call.1} parent=1 // pred_check
      _
    $region3: #{tpu_custom_call.1} parent=1 // pred_check_branch
      %10 = sbr.rel (0) target = $region5
    $region4: #{tpu_custom_call.1} parent=1 // pred_region
      _
    $region5: #{tpu_custom_call.1} parent=1 // pred_fallthru
      _
    // Predicated region
    $region6: #{tpu_custom_call.1} parent=1 // pred_check
      _
    $region7: #{tpu_custom_call.1} parent=1 // pred_check_branch
      %12 = sbr.rel (0) target = $region9
    $region8: #{tpu_custom_call.1} parent=1 // pred_region
      _
    $region9: #{tpu_custom_call.1} parent=1 // pred_fallthru
      _
    // Predicated region
    $region10: #{tpu_custom_call.1} parent=1 // pred_check
      _
    $region11: #{tpu_custom_call.1} parent=1 // pred_check_branch
      %14 = sbr.rel (0) target = $region13
    $region12: #{tpu_custom_call.1} parent=1 // pred_region
      _
    $region13: #{tpu_custom_call.1} parent=1 // pred_fallthru
      _
    %v16 = vld [vmem:[%s0] sm:$0xff]
    %v17 = vld [vmem:[%s1] sm:$0xf]
    %v18 = vld [vmem:[%s1 + $0x4] sm:$0xf]
    %v19 = vld [vmem:[%s1 + $0x8] sm:$0xf]
    %v20 = vld [vmem:[%s1 + $0xc] sm:$0xf]
    %v21 = vld [vmem:[%s1 + $0x10] sm:$0xf]
    %v22 = vld [vmem:[%s1 + $0x14] sm:$0xf]
    %v23 = vld [vmem:[%s1 + $0x18] sm:$0xf]
    %v24 = vld [vmem:[%s1 + $0x1c] sm:$0xf]
    %v25 = vld [vmem:[%s1 + $0x20] sm:$0xf]
    %v26 = vld [vmem:[%s1 + $0x24] sm:$0xf]
    %v27 = vld [vmem:[%s1 + $0x28] sm:$0xf]
    %v28 = vld [vmem:[%s1 + $0x2c] sm:$0xf]
    %v29 = vld [vmem:[%s1 + $0x30] sm:$0xf]
    %v30 = vld [vmem:[%s1 + $0x34] sm:$0xf]
    %v31 = vld [vmem:[%s1 + $0x38] sm:$0xf]
    %v32 = vld [vmem:[%s1 + $0x3c] sm:$0xf]
    %v33 = vld [vmem:[%s1 + $0x40] sm:$0xf]
    %v34 = vld [vmem:[%s1 + $0x44] sm:$0xf]
    %v35 = vld [vmem:[%s1 + $0x48] sm:$0xf]
    %v36 = vld [vmem:[%s1 + $0x4c] sm:$0xf]
    %v37 = vld [vmem:[%s1 + $0x50] sm:$0xf]
    %v38 = vld [vmem:[%s1 + $0x54] sm:$0xf]
    %v39 = vld [vmem:[%s1 + $0x58] sm:$0xf]
    %v40 = vld [vmem:[%s1 + $0x5c] sm:$0xf]
    %v41 = vld [vmem:[%s2] sm:$0x1]
    %v43 = vlaneseq
    %v44 = vshrl.u32 %v43, 7
    %v45 = vsub.s32 0, %v44
    %v46 = vrot.slane %v41, %v45
    %v49 = vunpack.c.l.b16 %v16
    %v50 = vunpack.c.h.b16 %v16
    %v51 = vpack.c.b16 %v49, %v49
    %v52 = vpack.c.b16 %v50, %v50
    %v78 = vunpack.c.l.b16 %v17
    %v79 = vunpack.c.l.b16 %v18
    %v80 = vunpack.c.l.b16 %v19
    %v81 = vunpack.c.l.b16 %v20
    %v82 = vunpack.c.l.b16 %v21
    %v83 = vunpack.c.l.b16 %v22
    %v84 = vunpack.c.l.b16 %v23
    %v85 = vunpack.c.l.b16 %v24
    %v86 = vunpack.c.l.b16 %v25
    %v87 = vunpack.c.l.b16 %v26
    %v88 = vunpack.c.l.b16 %v27
    %v89 = vunpack.c.l.b16 %v28
    %v90 = vunpack.c.l.b16 %v29
    %v91 = vunpack.c.l.b16 %v30
    %v92 = vunpack.c.l.b16 %v31
    %v93 = vunpack.c.l.b16 %v32
    %v94 = vunpack.c.l.b16 %v33
    %v95 = vunpack.c.l.b16 %v34
    %v96 = vunpack.c.l.b16 %v35
    %v97 = vunpack.c.l.b16 %v36
    %v98 = vunpack.c.l.b16 %v37
    %v99 = vunpack.c.l.b16 %v38
    %v100 = vunpack.c.l.b16 %v39
    %v101 = vunpack.c.l.b16 %v40
    %v102 = vpack.c.b16 %v79, %v78
    %v103 = vpack.c.b16 %v81, %v80
    %v104 = vpack.c.b16 %v83, %v82
    %v105 = vpack.c.b16 %v85, %v84
    %v106 = vpack.c.b16 %v87, %v86
    %v107 = vpack.c.b16 %v89, %v88
    %v108 = vpack.c.b16 %v91, %v90
    %v109 = vpack.c.b16 %v93, %v92
    %v110 = vpack.c.b16 %v95, %v94
    %v111 = vpack.c.b16 %v97, %v96
    %v112 = vpack.c.b16 %v99, %v98
    %v113 = vpack.c.b16 %v101, %v100
    %vm126 = vcmask 523264
    %v128 = vsel %vm126, %v52, 0
    %130 = vmatprep.subr.bf16.mxu0 0
    %131 = vmatpush1.bf16.msra.mxu0 %v102
    %132 = vmatprep.subr.bf16.mxu0 0
    %133 = vmatpush1.bf16.msra.mxu0 %v103
    %134 = vmatprep.subr.bf16.mxu0 0
    %135 = vmatpush1.bf16.msra.mxu0 %v104
    %136 = vmatprep.subr.bf16.mxu0 0
    %137 = vmatpush1.bf16.msra.mxu0 %v105
    %138 = vmatprep.subr.bf16.mxu0 0
    %139 = vmatpush1.bf16.msra.mxu0 %v106
    %140 = vmatprep.subr.bf16.mxu0 0
    %141 = vmatpush1.bf16.msra.mxu0 %v107
    %142 = vmatprep.subr.bf16.mxu0 0
    %143 = vmatpush1.bf16.msra.mxu0 %v108
    %144 = vmatprep.subr.bf16.mxu0 0
    %145 = vmatpush1.bf16.msra.mxu0 %v109
    %146 = vmatprep.subr.bf16.mxu0 0
    %147 = vmatpush1.bf16.msra.mxu0 %v110
    %148 = vmatprep.subr.bf16.mxu0 0
    %149 = vmatpush1.bf16.msra.mxu0 %v111
    %150 = vmatprep.subr.bf16.mxu0 0
    %151 = vmatpush1.bf16.msra.mxu0 %v112
    %152 = vmatprep.subr.bf16.mxu0 0
    %153 = vmatpush1.bf16.msra.mxu0 %v113
    %154 = vmatprep.subr.bf16.mxu0 0
    %155 = vmatpush1.bf16.msra.mxu0 0
    %156 = vmatprep.subr.bf16.mxu0 0
    %157 = vmatpush1.bf16.msra.mxu0 0
    %158 = vmatprep.subr.bf16.mxu0 0
    %159 = vmatpush1.bf16.msra.mxu0 0
    %160 = vmatprep.subr.bf16.mxu0 0
    %161 = vmatpush1.bf16.msra.mxu0 0
    %162 = vmatprep.mubr.bf16.mxu0 %v128
    %163 = vmatmul.mubr.bf16.gmra.mrb[0].mxu0 %v51
    %v164 = vpop.f32.mrb[0].mxu0
    %v165 = vadd.f32 %v46, %v164
    %v166 = vpop.f32.mrb[0].mxu0
    %v167 = vpop.f32.mrb[0].mxu0
    %v168 = vpop.f32.mrb[0].mxu0
    %169 = vdwg.mxu0
    %vm170 = vcmask 261120
    %171 = vst.msk [vmem:[#allocation2] sm:$0xff] %vm170, %v165
    // Predicated region
    $region14: #{tpu_custom_call.1} parent=1 // pred_check
      _
    $region15: #{tpu_custom_call.1} parent=1 // pred_check_branch
      %173 = sbr.rel (0) target = $region17
    $region16: #{tpu_custom_call.1} parent=1 // pred_region
      %s175 = ssub.s32 128, 128
      %176 = vsyncadd [#allocation3], %s175
      %s178 = sshll.u32 [#allocation2], 4
      %s179 = int_to_ptr.vmem [resolvable:$true] %s178
      %181 = dma.vmem_to_hbm [thread:$0]  %s179, 128, %s3, [#allocation3]
    $region17: #{tpu_custom_call.1} parent=1 // pred_fallthru
      _
    // Predicated region
    $region18: #{tpu_custom_call.1} parent=1 // pred_check
      _
    $region19: #{tpu_custom_call.1} parent=1 // pred_check_branch
      %183 = sbr.rel (0) target = $region21
    $region20: #{tpu_custom_call.1} parent=1 // pred_region
      %184 = dma.done [#allocation3], 128
    $region21: #{tpu_custom_call.1} parent=1 // pred_fallthru
      _
    %185 = vsyncpa [#allocation3], 1

</llo_original>
